<compile_context>
chip_gen: v7x
topology: tpu7x:2x2x1
jax: 0.10.0
libtpu: 0.0.40
codegen_flags: <defaults>
</compile_context>

<pallas_src>
import jax
import jax.numpy as jnp
from jax.experimental import pallas as pl
from jax.experimental.pallas import tpu as pltpu

DEPTH = 4
WIDTH = 4
X_DIM = 250
LAYERS = [X_DIM + 1] + [WIDTH] * (DEPTH - 1) + [1]   # [251, 4, 4, 4, 1]

_SUB = 8          # sublane padding for the tiny 4-wide hidden dims


def _round_up(a, m):
    return (a + m - 1) // m * m


def mlp_kernel(x_ref,                 # (bt, 251)  VMEM, f32 or bf16 (streamed)
               w1_ref,                # (8, 251)   VMEM (rows 4..7 zero)
               b1_ref,                # (8, 1)     VMEM f32 (rows 4..7 zero)
               w2_ref, b2_ref,        # (8, 8), (8, 1)  VMEM f32 (zero-padded)
               w3_ref, b3_ref,        # (8, 8), (8, 1)
               w4_ref, b4_ref,        # (8, 8), (8, 1)  (row 0 is the real row)
               o_ref):                # (1, 1, bt) VMEM f32
    # Layer 1 on the MXU, produced directly features-major (lane-dense):
    #   h = W1 (8,251) . x(bt,251)^T  -> (8, bt)
    h = jax.lax.dot_general(
        w1_ref[...], x_ref[...],
        dimension_numbers=(((1,), (1,)), ((), ())),
        preferred_element_type=jnp.float32)
    # Whole-block bias + tanh: padded rows are tanh(0 + 0) = 0 -> exact.
    h = jnp.tanh(h + b1_ref[...])

    # Hidden layers 2 and 3 (4->4, zero-padded to 8->8) on the otherwise-idle
    # MXU; full (8, bt) blocks throughout, no sublane slicing.
    h = jnp.tanh(jnp.dot(w2_ref[...], h, preferred_element_type=jnp.float32)
                 + b2_ref[...])
    h = jnp.tanh(jnp.dot(w3_ref[...], h, preferred_element_type=jnp.float32)
                 + b3_ref[...])

    # Output layer (4->1 lives in row 0), no activation.
    z = (jnp.dot(w4_ref[...], h, preferred_element_type=jnp.float32)
         + b4_ref[...])
    # Single sublane-0 slice only at the final store; (1, bt) is lane-dense.
    o_ref[...] = z[0:1, :].reshape(o_ref.shape).astype(o_ref.dtype)


def mlp_forward(x, params, *, batch_tile=4096, stream_bf16=False):
    """x: (B, 251).  params: list of (W, b) in PyTorch layout W=(out,in),
    b=(out,).  Returns (B, 1) float32."""
    B, D = x.shape
    assert D == LAYERS[0], (D, LAYERS[0])
    (w1, b1), (w2, b2), (w3, b3), (w4, b4) = params

    # ---- batch tiling ------------------------------------------------------
    bt = min(batch_tile, _round_up(B, 8))
    # Keep >= 2 grid steps when the batch allows it so the "parallel" axis can
    # be sharded across v7x's two TensorCores (harmless on v5e/v6e).
    if B > 8 and pl.cdiv(B, bt) < 2:
        bt = _round_up(pl.cdiv(B, 2), 8)
    bt = max(8, _round_up(bt, 8))
    nblk = pl.cdiv(B, bt)
    grid = (nblk,)

    # ---- operand preparation (no copy of x in f32 mode) --------------------
    x_dtype = jnp.bfloat16 if (stream_bf16 or x.dtype == jnp.bfloat16) \
        else jnp.float32
    x_in = x.astype(x_dtype)

    w1p = jnp.zeros((_SUB, D), x_dtype).at[:WIDTH, :].set(w1.astype(x_dtype))

    def pad_w(w):
        o, i = w.shape
        return jnp.zeros((_SUB, _SUB), jnp.float32).at[:o, :i].set(
            w.astype(jnp.float32))

    def pad_b(b):
        return jnp.zeros((_SUB, 1), jnp.float32).at[:b.shape[0], 0].set(
            b.astype(jnp.float32))

    b1p = pad_b(b1)
    w2p, b2p = pad_w(w2), pad_b(b2)
    w3p, b3p = pad_w(w3), pad_b(b3)
    w4p, b4p = pad_w(w4), pad_b(b4)

    # ---- specs -------------------------------------------------------------
    const = lambda i: (0, 0)
    in_specs = [
        pl.BlockSpec((bt, D), lambda i: (i, 0)),        # x tile (streamed)
        pl.BlockSpec((_SUB, D), const),                 # W1 (resident)
        pl.BlockSpec((_SUB, 1), const),                 # b1
        pl.BlockSpec((_SUB, _SUB), const),              # W2
        pl.BlockSpec((_SUB, 1), const),                 # b2
        pl.BlockSpec((_SUB, _SUB), const),              # W3
        pl.BlockSpec((_SUB, 1), const),                 # b3
        pl.BlockSpec((_SUB, _SUB), const),              # W4
        pl.BlockSpec((_SUB, 1), const),                 # b4
    ]
    out_specs = pl.BlockSpec((1, 1, bt), lambda i: (i, 0, 0))
    out_shape = jax.ShapeDtypeStruct((nblk, 1, bt), jnp.float32)

    # ---- advisory cost estimate -------------------------------------------
    flops = 2 * B * D * _SUB + 3 * (2 * _SUB * _SUB * B)
    x_bytes = jnp.dtype(x_dtype).itemsize
    bytes_accessed = B * D * x_bytes + B * 4 + _SUB * D * x_bytes + 4 * 1024
    cost = pl.CostEstimate(flops=int(flops),
                           transcendentals=int(3 * _SUB * B),
                           bytes_accessed=int(bytes_accessed))

    # ---- compiler params ----------------------------------------------------
    # x tile is double-buffered; only raise the scoped VMEM limit when a very
    # large tile is requested, and cap it by the actual chip capacity
    # (v7x: 64 MiB/TC vs 128 MiB on v5e/v6e).
    vmem_need = 2 * bt * D * x_bytes + 2 * bt * 4 \
        + _SUB * D * x_bytes + 8 * _SUB * _SUB * 4 + (1 << 20)
    cp_kwargs = dict(dimension_semantics=("parallel",))
    if vmem_need > (12 << 20):
        try:
            cap = int(0.75 * pltpu.get_tpu_info().vmem_capacity_bytes)
        except Exception:
            cap = 48 << 20
        cp_kwargs["vmem_limit_bytes"] = int(
            min(max(int(1.5 * vmem_need), 16 << 20), cap))

    out = pl.pallas_call(
        mlp_kernel,
        out_shape=out_shape,
        grid_spec=pltpu.PrefetchScalarGridSpec(
            num_scalar_prefetch=0,
            grid=grid,
            in_specs=in_specs,
            out_specs=out_specs,
        ),
        compiler_params=pltpu.CompilerParams(**cp_kwargs),
        cost_estimate=cost,
    )(x_in, w1p, b1p, w2p, b2p, w3p, b3p, w4p, b4p)

    # (nblk, 1, bt) flattens row-major to batch order i*bt + j.
    return out.reshape(nblk * bt, 1)[:B]


def init_params(key):
    """nn.Linear default init: U(-1/sqrt(fan_in), 1/sqrt(fan_in)).
    Returned in PyTorch layout: W = (out, in), b = (out,)."""
    params = []
    for fan_in, fan_out in zip(LAYERS[:-1], LAYERS[1:]):
        key, kw, kb = jax.random.split(key, 3)
        bound = 1.0 / float(jnp.sqrt(float(fan_in)))
        w = jax.random.uniform(kw, (fan_out, fan_in), jnp.float32, -bound, bound)
        b = jax.random.uniform(kb, (fan_out,), jnp.float32, -bound, bound)
        params.append((w, b))
    return params


def mlp_reference(x, params):
    h = x
    for i, (w, b) in enumerate(params):
        h = h @ w.T + b
        if i != len(params) - 1:
            h = jnp.tanh(h)
    return h


if __name__ == "__main__":
    key = jax.random.PRNGKey(0)
    kx, kp = jax.random.split(key)

    B = 40                                   # small batch for the smoke test
    x = jax.random.normal(kx, (B, LAYERS[0]), dtype=jnp.float32)
    params = init_params(kp)

    ref = mlp_reference(x, params)

    # Small explicit tile: exercises a 3-step grid plus a ragged final block.
    out_small = jax.block_until_ready(mlp_forward(x, params, batch_tile=16))
    # Default configuration: tile clamped to the batch, grid split into 2
    # steps (megacore path on v7x).
    out_default = jax.block_until_ready(mlp_forward(x, params))

    assert out_small.shape == (B, 1), out_small.shape
    assert out_default.shape == (B, 1), out_default.shape
    err1 = float(jnp.max(jnp.abs(out_small - ref)))
    err2 = float(jnp.max(jnp.abs(out_default - ref)))
    assert jnp.allclose(out_small, ref, atol=1e-4, rtol=1e-4), err1
    assert jnp.allclose(out_default, ref, atol=1e-4, rtol=1e-4), err2

    print("KERNEL_OK")
</pallas_src>

<mosaic_0001>
module attributes {stable_mosaic.version = 11 : i64} {
  func.func @mlp_kernel(%arg0: i32, %arg1: memref<16x251xf32, #tpu.memory_space<vmem>>, %arg2: memref<8x251xf32, #tpu.memory_space<vmem>>, %arg3: memref<8x1xf32, #tpu.memory_space<vmem>>, %arg4: memref<8x8xf32, #tpu.memory_space<vmem>>, %arg5: memref<8x1xf32, #tpu.memory_space<vmem>>, %arg6: memref<8x8xf32, #tpu.memory_space<vmem>>, %arg7: memref<8x1xf32, #tpu.memory_space<vmem>>, %arg8: memref<8x8xf32, #tpu.memory_space<vmem>>, %arg9: memref<8x1xf32, #tpu.memory_space<vmem>>, %arg10: memref<1x1x16xf32, #tpu.memory_space<vmem>>) attributes {dimension_semantics = [#tpu.dimension_semantics<parallel>], iteration_bounds = array<i64: 3>, scalar_prefetch = 0 : i64, scratch_operands = 0 : i64, tpu.core_type = #tpu.core_type<tc>, window_params = [{transform_indices = @transform_0, window_bounds = array<i64: 16, 251>}, {pipeline_mode = #tpu.pipeline_mode<synchronous>, transform_indices = @transform_1, window_bounds = array<i64: 8, 251>}, {pipeline_mode = #tpu.pipeline_mode<synchronous>, transform_indices = @transform_2, window_bounds = array<i64: 8, 1>}, {pipeline_mode = #tpu.pipeline_mode<synchronous>, transform_indices = @transform_3, window_bounds = array<i64: 8, 8>}, {pipeline_mode = #tpu.pipeline_mode<synchronous>, transform_indices = @transform_4, window_bounds = array<i64: 8, 1>}, {pipeline_mode = #tpu.pipeline_mode<synchronous>, transform_indices = @transform_5, window_bounds = array<i64: 8, 8>}, {pipeline_mode = #tpu.pipeline_mode<synchronous>, transform_indices = @transform_6, window_bounds = array<i64: 8, 1>}, {pipeline_mode = #tpu.pipeline_mode<synchronous>, transform_indices = @transform_7, window_bounds = array<i64: 8, 8>}, {pipeline_mode = #tpu.pipeline_mode<synchronous>, transform_indices = @transform_8, window_bounds = array<i64: 8, 1>}, {transform_indices = @transform_9, window_bounds = array<i64: 1, 1, 16>}]} {
    %c0 = arith.constant 0 : index
    %c0_0 = arith.constant 0 : index
    %0 = vector.load %arg2[%c0, %c0_0] : memref<8x251xf32, #tpu.memory_space<vmem>>, vector<8x251xf32>
    %c0_1 = arith.constant 0 : index
    %c0_2 = arith.constant 0 : index
    %1 = vector.load %arg1[%c0_1, %c0_2] : memref<16x251xf32, #tpu.memory_space<vmem>>, vector<16x251xf32>
    %cst = arith.constant dense<0.000000e+00> : vector<8x16xf32>
    %2 = tpu.matmul %0, %1, %cst {dimension_numbers = #tpu.dot_dimension_numbers<[1], [1], [0], [0], [0, 0, 1, 0], [], []>} : vector<8x251xf32>, vector<16x251xf32>, vector<8x16xf32> -> vector<8x16xf32>
    %c0_3 = arith.constant 0 : index
    %c0_4 = arith.constant 0 : index
    %3 = vector.load %arg3[%c0_3, %c0_4] : memref<8x1xf32, #tpu.memory_space<vmem>>, vector<8x1xf32>
    %4 = vector.broadcast %3 : vector<8x1xf32> to vector<8x16xf32>
    %5 = arith.addf %2, %4 : vector<8x16xf32>
    %6 = math.tanh %5 : vector<8x16xf32>
    %c0_5 = arith.constant 0 : index
    %c0_6 = arith.constant 0 : index
    %7 = vector.load %arg4[%c0_5, %c0_6] : memref<8x8xf32, #tpu.memory_space<vmem>>, vector<8x8xf32>
    %cst_7 = arith.constant dense<0.000000e+00> : vector<8x16xf32>
    %8 = tpu.matmul %7, %6, %cst_7 {dimension_numbers = #tpu.dot_dimension_numbers<[1], [0], [0], [1], [0, 0, 1, 1], [], []>} : vector<8x8xf32>, vector<8x16xf32>, vector<8x16xf32> -> vector<8x16xf32>
    %c0_8 = arith.constant 0 : index
    %c0_9 = arith.constant 0 : index
    %9 = vector.load %arg5[%c0_8, %c0_9] : memref<8x1xf32, #tpu.memory_space<vmem>>, vector<8x1xf32>
    %10 = vector.broadcast %9 : vector<8x1xf32> to vector<8x16xf32>
    %11 = arith.addf %8, %10 : vector<8x16xf32>
    %12 = math.tanh %11 : vector<8x16xf32>
    %c0_10 = arith.constant 0 : index
    %c0_11 = arith.constant 0 : index
    %13 = vector.load %arg6[%c0_10, %c0_11] : memref<8x8xf32, #tpu.memory_space<vmem>>, vector<8x8xf32>
    %cst_12 = arith.constant dense<0.000000e+00> : vector<8x16xf32>
    %14 = tpu.matmul %13, %12, %cst_12 {dimension_numbers = #tpu.dot_dimension_numbers<[1], [0], [0], [1], [0, 0, 1, 1], [], []>} : vector<8x8xf32>, vector<8x16xf32>, vector<8x16xf32> -> vector<8x16xf32>
    %c0_13 = arith.constant 0 : index
    %c0_14 = arith.constant 0 : index
    %15 = vector.load %arg7[%c0_13, %c0_14] : memref<8x1xf32, #tpu.memory_space<vmem>>, vector<8x1xf32>
    %16 = vector.broadcast %15 : vector<8x1xf32> to vector<8x16xf32>
    %17 = arith.addf %14, %16 : vector<8x16xf32>
    %18 = math.tanh %17 : vector<8x16xf32>
    %c0_15 = arith.constant 0 : index
    %c0_16 = arith.constant 0 : index
    %19 = vector.load %arg8[%c0_15, %c0_16] : memref<8x8xf32, #tpu.memory_space<vmem>>, vector<8x8xf32>
    %cst_17 = arith.constant dense<0.000000e+00> : vector<8x16xf32>
    %20 = tpu.matmul %19, %18, %cst_17 {dimension_numbers = #tpu.dot_dimension_numbers<[1], [0], [0], [1], [0, 0, 1, 1], [], []>} : vector<8x8xf32>, vector<8x16xf32>, vector<8x16xf32> -> vector<8x16xf32>
    %c0_18 = arith.constant 0 : index
    %c0_19 = arith.constant 0 : index
    %21 = vector.load %arg9[%c0_18, %c0_19] : memref<8x1xf32, #tpu.memory_space<vmem>>, vector<8x1xf32>
    %22 = vector.broadcast %21 : vector<8x1xf32> to vector<8x16xf32>
    %23 = arith.addf %20, %22 : vector<8x16xf32>
    %24 = vector.extract_strided_slice %23 {offsets = [0, 0], sizes = [1, 16], strides = [1, 1]} : vector<8x16xf32> to vector<1x16xf32>
    %25 = vector.shape_cast %24 : vector<1x16xf32> to vector<1x1x16xf32>
    %c0_20 = arith.constant 0 : index
    %c0_21 = arith.constant 0 : index
    %c0_22 = arith.constant 0 : index
    %26 = vector.load %arg10[%c0_20, %c0_21, %c0_22] : memref<1x1x16xf32, #tpu.memory_space<vmem>>, vector<1x1x16xf32>
    tpu.vector_store %arg10[%c0_20, %c0_21, %c0_22], %25 {strides = array<i32>} : memref<1x1x16xf32, #tpu.memory_space<vmem>>, vector<1x1x16xf32>,
    return
  }
  func.func @transform_0(%arg0: i32) -> (i32, i32) {
    %c0_i32 = arith.constant 0 : i32
    %c0_i32_0 = arith.constant 0 : i32
    return %arg0, %c0_i32 : i32, i32
  }
  func.func @transform_1(%arg0: i32) -> (i32, i32) {
    %c0_i32 = arith.constant 0 : i32
    %c0_i32_0 = arith.constant 0 : i32
    %c0_i32_1 = arith.constant 0 : i32
    return %c0_i32, %c0_i32_0 : i32, i32
  }
  func.func @transform_2(%arg0: i32) -> (i32, i32) {
    %c0_i32 = arith.constant 0 : i32
    %c0_i32_0 = arith.constant 0 : i32
    %c0_i32_1 = arith.constant 0 : i32
    return %c0_i32, %c0_i32_0 : i32, i32
  }
  func.func @transform_3(%arg0: i32) -> (i32, i32) {
    %c0_i32 = arith.constant 0 : i32
    %c0_i32_0 = arith.constant 0 : i32
    %c0_i32_1 = arith.constant 0 : i32
    return %c0_i32, %c0_i32_0 : i32, i32
  }
  func.func @transform_4(%arg0: i32) -> (i32, i32) {
    %c0_i32 = arith.constant 0 : i32
    %c0_i32_0 = arith.constant 0 : i32
    %c0_i32_1 = arith.constant 0 : i32
    return %c0_i32, %c0_i32_0 : i32, i32
  }
  func.func @transform_5(%arg0: i32) -> (i32, i32) {
    %c0_i32 = arith.constant 0 : i32
    %c0_i32_0 = arith.constant 0 : i32
    %c0_i32_1 = arith.constant 0 : i32
    return %c0_i32, %c0_i32_0 : i32, i32
  }
  func.func @transform_6(%arg0: i32) -> (i32, i32) {
    %c0_i32 = arith.constant 0 : i32
    %c0_i32_0 = arith.constant 0 : i32
    %c0_i32_1 = arith.constant 0 : i32
    return %c0_i32, %c0_i32_0 : i32, i32
  }
  func.func @transform_7(%arg0: i32) -> (i32, i32) {
    %c0_i32 = arith.constant 0 : i32
    %c0_i32_0 = arith.constant 0 : i32
    %c0_i32_1 = arith.constant 0 : i32
    return %c0_i32, %c0_i32_0 : i32, i32
  }
  func.func @transform_8(%arg0: i32) -> (i32, i32) {
    %c0_i32 = arith.constant 0 : i32
    %c0_i32_0 = arith.constant 0 : i32
    %c0_i32_1 = arith.constant 0 : i32
    return %c0_i32, %c0_i32_0 : i32, i32
  }
  func.func @transform_9(%arg0: i32) -> (i32, i32, i32) {
    %c0_i32 = arith.constant 0 : i32
    %c0_i32_0 = arith.constant 0 : i32
    %c0_i32_1 = arith.constant 0 : i32
    return %arg0, %c0_i32, %c0_i32_0 : i32, i32, i32
  }
}

</mosaic_0001>

<llo_original>
// kernel: tpu_custom_call.1
$region0: #{tpu_custom_call.1}
  #allocation0 [shape = 'u32[]', space=smem, size = 0x4, offset = 0x4, fixed_abs, tag = 'smem constant byte address 0x4 - core index']
  #allocation1 [shape = 'u32[144,128]{1,0:T(1,128)}', space=vmem, size = 0x12000, scoped, tag = 'internal scratch']
  %s0 = inlined_call_operand.hbm [shape: f32[40,251], index: 0, kind: input, shape index: {}]
  %s1 = inlined_call_operand.vmem [shape: f32[8,251], index: 1, kind: input, shape index: {}]
  %s2 = inlined_call_operand.vmem [shape: f32[8,1], index: 2, kind: input, shape index: {}]
  %s3 = inlined_call_operand.vmem [shape: f32[8,8], index: 3, kind: input, shape index: {}]
  %s4 = inlined_call_operand.vmem [shape: f32[8,1], index: 4, kind: input, shape index: {}]
  %s5 = inlined_call_operand.vmem [shape: f32[8,8], index: 5, kind: input, shape index: {}]
  %s6 = inlined_call_operand.vmem [shape: f32[8,1], index: 6, kind: input, shape index: {}]
  %s7 = inlined_call_operand.vmem [shape: f32[8,8], index: 7, kind: input, shape index: {}]
  %s8 = inlined_call_operand.vmem [shape: f32[8,1], index: 8, kind: input, shape index: {}]
  %s9 = inlined_call_operand.hbm [shape: f32[3,1,16], index: 9, kind: output, shape index: {}]
  %s10 = sld [smem:[#allocation0]]
  $region73: #{tpu_custom_call.1} parent=0
    _
  %s12 = ssub.s32 1, %s10
  %s13 = scalar_select 0, %s12, %s10
  $region1: #{tpu_custom_call.1} parent=0
    #allocation2 [shape = 'u8[32768]{0}', space=vmem, size = 0x8000, scoped, tag = 'input window, operand 0']
    #allocation3 [shape = 's32[2]{0}', space=sflag, size = 0x8, scoped, tag = 'scoped memory for tpu_custom_call.1']
    #allocation4 [shape = 's32[2]{0}', space=sflag, size = 0x8, scoped, tag = 'scoped memory for tpu_custom_call.1']
    #allocation5 [shape = 'u8[1024]{0}', space=vmem, size = 0x400, scoped, tag = 'output window, operand 0']
    %14 = vsyncpa [#allocation3], 0
    %s15 = scalar_lea.sflag [#allocation3], 1
    %16 = vsyncpa %s15, 0
    %17 = vsyncpa [#allocation4], 0
    %s18 = scalar_lea.sflag [#allocation4], 1
    %19 = vsyncpa %s18, 0
    loop: start=0, step=1, limit=5
    $region2: #{tpu_custom_call.1} parent=1 // loop_pre_header
      _
    $region3: #{tpu_custom_call.1} parent=1 // loop_header
      %s21 = sphi 0, %s25
      %p22 = scmp.ge.s32.totalorder %s21, 5
      %s31 = sphi 0, %s33
      %s34 = sphi 0, %s31
      %s35 = sphi 0, %s34
      %s51 = sphi 0, %s35
      %s55 = sphi 0, %s55
      %s57 = sphi 0, %s55
      %s58 = sphi 0, %s57
      %s72 = sphi 0, %s58
      %s76 = sphi 0, %s76
      %s78 = sphi 0, %s76
      %s79 = sphi 0, %s78
      %s93 = sphi 0, %s79
      %s97 = sphi 0, %s97
      %s99 = sphi 0, %s97
      %s100 = sphi 0, %s99
      %s114 = sphi 0, %s100
      %s118 = sphi 0, %s118
      %s120 = sphi 0, %s118
      %s121 = sphi 0, %s120
      %s135 = sphi 0, %s121
      %s139 = sphi 0, %s139
      %s141 = sphi 0, %s139
      %s142 = sphi 0, %s141
      %s156 = sphi 0, %s142
      %s160 = sphi 0, %s160
      %s162 = sphi 0, %s160
      %s163 = sphi 0, %s162
      %s177 = sphi 0, %s163
      %s181 = sphi 0, %s181
      %s183 = sphi 0, %s181
      %s184 = sphi 0, %s183
      %s198 = sphi 0, %s184
      %s202 = sphi 0, %s202
      %s204 = sphi 0, %s202
      %s205 = sphi 0, %s204
      %s219 = sphi 0, %s205
      %s225 = sphi 0, %s227
      %s228 = sphi 0, %s225
      %s229 = sphi 0, %s228
      %s245 = sphi 0, %s229
    $region4: #{tpu_custom_call.1} parent=1 // loop_header_branch
      %24 = sbr.rel (%p22) target = $region8
    $region5: #{tpu_custom_call.1} parent=1 // loop_body
      %s26 = ssub.s32 %s21, 1
      %s27 = ssub.s32 %s21, 2
      %s28 = sadd.s32 %s21, 1
      %s29 = ssub.s32 %s21, %s28
      %p30 = scmp.eq.s32.totalorder %s29, 0
      %s32 = sadd.s32 %s31, 1
      %s33 = scalar_select %p30, %s31, %s32
      %p36 = pneg %p30
      %p37 = scmp.eq.s32.totalorder %s21, 2
      %p38 = por %p36, %p37
      %p39 = scmp.ne.s32.totalorder %s31, %s34
      %p40 = scmp.eq.s32.totalorder %s21, 0
      %p41 = por %p39, %p40
      %p42 = scmp.ne.s32.totalorder %s31, %s34
      %p43 = scmp.eq.s32.totalorder %s26, 2
      %p44 = por %p42, %p43
      %p45 = scmp.ne.s32.totalorder %s34, %s35
      %p46 = scmp.eq.s32.totalorder %s26, 0
      %p47 = por %p45, %p46
      %p48 = scmp.ne.s32.totalorder %s34, %s35
      %p49 = scmp.eq.s32.totalorder %s27, 2
      %p50 = por %p48, %p49
      %p52 = scmp.ne.s32.totalorder %s35, %s51
      %p53 = scmp.eq.s32.totalorder %s27, 0
      %p54 = por %p52, %p53
      %s56 = sadd.s32 %s55, 1
      %p59 = scmp.eq.s32.totalorder %s21, 2
      %p60 = scmp.ne.s32.totalorder %s55, %s57
      %p61 = scmp.eq.s32.totalorder %s21, 0
      %p62 = por %p60, %p61
      %p63 = scmp.ne.s32.totalorder %s55, %s57
      %p64 = scmp.eq.s32.totalorder %s26, 2
      %p65 = por %p63, %p64
      %p66 = scmp.ne.s32.totalorder %s57, %s58
      %p67 = scmp.eq.s32.totalorder %s26, 0
      %p68 = por %p66, %p67
      %p69 = scmp.ne.s32.totalorder %s57, %s58
      %p70 = scmp.eq.s32.totalorder %s27, 2
      %p71 = por %p69, %p70
      %p73 = scmp.ne.s32.totalorder %s58, %s72
      %p74 = scmp.eq.s32.totalorder %s27, 0
      %p75 = por %p73, %p74
      %s77 = sadd.s32 %s76, 1
      %p80 = scmp.eq.s32.totalorder %s21, 2
      %p81 = scmp.ne.s32.totalorder %s76, %s78
      %p82 = scmp.eq.s32.totalorder %s21, 0
      %p83 = por %p81, %p82
      %p84 = scmp.ne.s32.totalorder %s76, %s78
      %p85 = scmp.eq.s32.totalorder %s26, 2
      %p86 = por %p84, %p85
      %p87 = scmp.ne.s32.totalorder %s78, %s79
      %p88 = scmp.eq.s32.totalorder %s26, 0
      %p89 = por %p87, %p88
      %p90 = scmp.ne.s32.totalorder %s78, %s79
      %p91 = scmp.eq.s32.totalorder %s27, 2
      %p92 = por %p90, %p91
      %p94 = scmp.ne.s32.totalorder %s79, %s93
      %p95 = scmp.eq.s32.totalorder %s27, 0
      %p96 = por %p94, %p95
      %s98 = sadd.s32 %s97, 1
      %p101 = scmp.eq.s32.totalorder %s21, 2
      %p102 = scmp.ne.s32.totalorder %s97, %s99
      %p103 = scmp.eq.s32.totalorder %s21, 0
      %p104 = por %p102, %p103
      %p105 = scmp.ne.s32.totalorder %s97, %s99
      %p106 = scmp.eq.s32.totalorder %s26, 2
      %p107 = por %p105, %p106
      %p108 = scmp.ne.s32.totalorder %s99, %s100
      %p109 = scmp.eq.s32.totalorder %s26, 0
      %p110 = por %p108, %p109
      %p111 = scmp.ne.s32.totalorder %s99, %s100
      %p112 = scmp.eq.s32.totalorder %s27, 2
      %p113 = por %p111, %p112
      %p115 = scmp.ne.s32.totalorder %s100, %s114
      %p116 = scmp.eq.s32.totalorder %s27, 0
      %p117 = por %p115, %p116
      %s119 = sadd.s32 %s118, 1
      %p122 = scmp.eq.s32.totalorder %s21, 2
      %p123 = scmp.ne.s32.totalorder %s118, %s120
      %p124 = scmp.eq.s32.totalorder %s21, 0
      %p125 = por %p123, %p124
      %p126 = scmp.ne.s32.totalorder %s118, %s120
      %p127 = scmp.eq.s32.totalorder %s26, 2
      %p128 = por %p126, %p127
      %p129 = scmp.ne.s32.totalorder %s120, %s121
      %p130 = scmp.eq.s32.totalorder %s26, 0
      %p131 = por %p129, %p130
      %p132 = scmp.ne.s32.totalorder %s120, %s121
      %p133 = scmp.eq.s32.totalorder %s27, 2
      %p134 = por %p132, %p133
      %p136 = scmp.ne.s32.totalorder %s121, %s135
      %p137 = scmp.eq.s32.totalorder %s27, 0
      %p138 = por %p136, %p137
      %s140 = sadd.s32 %s139, 1
      %p143 = scmp.eq.s32.totalorder %s21, 2
      %p144 = scmp.ne.s32.totalorder %s139, %s141
      %p145 = scmp.eq.s32.totalorder %s21, 0
      %p146 = por %p144, %p145
      %p147 = scmp.ne.s32.totalorder %s139, %s141
      %p148 = scmp.eq.s32.totalorder %s26, 2
      %p149 = por %p147, %p148
      %p150 = scmp.ne.s32.totalorder %s141, %s142
      %p151 = scmp.eq.s32.totalorder %s26, 0
      %p152 = por %p150, %p151
      %p153 = scmp.ne.s32.totalorder %s141, %s142
      %p154 = scmp.eq.s32.totalorder %s27, 2
      %p155 = por %p153, %p154
      %p157 = scmp.ne.s32.totalorder %s142, %s156
      %p158 = scmp.eq.s32.totalorder %s27, 0
      %p159 = por %p157, %p158
      %s161 = sadd.s32 %s160, 1
      %p164 = scmp.eq.s32.totalorder %s21, 2
      %p165 = scmp.ne.s32.totalorder %s160, %s162
      %p166 = scmp.eq.s32.totalorder %s21, 0
      %p167 = por %p165, %p166
      %p168 = scmp.ne.s32.totalorder %s160, %s162
      %p169 = scmp.eq.s32.totalorder %s26, 2
      %p170 = por %p168, %p169
      %p171 = scmp.ne.s32.totalorder %s162, %s163
      %p172 = scmp.eq.s32.totalorder %s26, 0
      %p173 = por %p171, %p172
      %p174 = scmp.ne.s32.totalorder %s162, %s163
      %p175 = scmp.eq.s32.totalorder %s27, 2
      %p176 = por %p174, %p175
      %p178 = scmp.ne.s32.totalorder %s163, %s177
      %p179 = scmp.eq.s32.totalorder %s27, 0
      %p180 = por %p178, %p179
      %s182 = sadd.s32 %s181, 1
      %p185 = scmp.eq.s32.totalorder %s21, 2
      %p186 = scmp.ne.s32.totalorder %s181, %s183
      %p187 = scmp.eq.s32.totalorder %s21, 0
      %p188 = por %p186, %p187
      %p189 = scmp.ne.s32.totalorder %s181, %s183
      %p190 = scmp.eq.s32.totalorder %s26, 2
      %p191 = por %p189, %p190
      %p192 = scmp.ne.s32.totalorder %s183, %s184
      %p193 = scmp.eq.s32.totalorder %s26, 0
      %p194 = por %p192, %p193
      %p195 = scmp.ne.s32.totalorder %s183, %s184
      %p196 = scmp.eq.s32.totalorder %s27, 2
      %p197 = por %p195, %p196
      %p199 = scmp.ne.s32.totalorder %s184, %s198
      %p200 = scmp.eq.s32.totalorder %s27, 0
      %p201 = por %p199, %p200
      %s203 = sadd.s32 %s202, 1
      %p206 = scmp.eq.s32.totalorder %s21, 2
      %p207 = scmp.ne.s32.totalorder %s202, %s204
      %p208 = scmp.eq.s32.totalorder %s21, 0
      %p209 = por %p207, %p208
      %p210 = scmp.ne.s32.totalorder %s202, %s204
      %p211 = scmp.eq.s32.totalorder %s26, 2
      %p212 = por %p210, %p211
      %p213 = scmp.ne.s32.totalorder %s204, %s205
      %p214 = scmp.eq.s32.totalorder %s26, 0
      %p215 = por %p213, %p214
      %p216 = scmp.ne.s32.totalorder %s204, %s205
      %p217 = scmp.eq.s32.totalorder %s27, 2
      %p218 = por %p216, %p217
      %p220 = scmp.ne.s32.totalorder %s205, %s219
      %p221 = scmp.eq.s32.totalorder %s27, 0
      %p222 = por %p220, %p221
      %s223 = ssub.s32 %s21, %s28
      %p224 = scmp.eq.s32.totalorder %s223, 0
      %s226 = sadd.s32 %s225, 1
      %s227 = scalar_select %p224, %s225, %s226
      %p230 = pneg %p224
      %p231 = scmp.eq.s32.totalorder %s21, 2
      %p232 = por %p230, %p231
      %p233 = scmp.ne.s32.totalorder %s225, %s228
      %p234 = scmp.eq.s32.totalorder %s21, 0
      %p235 = por %p233, %p234
      %p236 = scmp.ne.s32.totalorder %s225, %s228
      %p237 = scmp.eq.s32.totalorder %s26, 2
      %p238 = por %p236, %p237
      %p239 = scmp.ne.s32.totalorder %s228, %s229
      %p240 = scmp.eq.s32.totalorder %s26, 0
      %p241 = por %p239, %p240
      %p242 = scmp.ne.s32.totalorder %s228, %s229
      %p243 = scmp.eq.s32.totalorder %s27, 2
      %p244 = por %p242, %p243
      %p246 = scmp.ne.s32.totalorder %s229, %s245
      %p247 = scmp.eq.s32.totalorder %s27, 0
      %p248 = por %p246, %p247
      %p249 = scmp.le.s32.totalorder 1, %s21
      %p250 = scmp.lt.s32.totalorder %s21, 4
      %p251 = pnand %p249, %p250
      %p252 = pneg %p251
      // Predicated region
      $region9: #{tpu_custom_call.1} parent=5 // pred_check
        _
      $region10: #{tpu_custom_call.1} parent=5 // pred_check_branch
        %254 = sbr.rel (%p251) target = $region12
      $region11: #{tpu_custom_call.1} parent=5 // pred_region
        %s255 = ssub.s32 %s21, 1
        // Predicated region
        $region13: #{tpu_custom_call.1} parent=11 // pred_check
          %p256 = pneg %p68
        $region14: #{tpu_custom_call.1} parent=11 // pred_check_branch
          %258 = sbr.rel (%p256) target = $region16
        $region15: #{tpu_custom_call.1} parent=11 // pred_region
          _
        $region16: #{tpu_custom_call.1} parent=11 // pred_fallthru
          _
        // Predicated region
        $region17: #{tpu_custom_call.1} parent=11 // pred_check
          %p259 = pneg %p89
        $region18: #{tpu_custom_call.1} parent=11 // pred_check_branch
          %261 = sbr.rel (%p259) target = $region20
        $region19: #{tpu_custom_call.1} parent=11 // pred_region
          _
        $region20: #{tpu_custom_call.1} parent=11 // pred_fallthru
          _
        // Predicated region
        $region21: #{tpu_custom_call.1} parent=11 // pred_check
          %p262 = pneg %p110
        $region22: #{tpu_custom_call.1} parent=11 // pred_check_branch
          %264 = sbr.rel (%p262) target = $region24
        $region23: #{tpu_custom_call.1} parent=11 // pred_region
          _
        $region24: #{tpu_custom_call.1} parent=11 // pred_fallthru
          _
        // Predicated region
        $region25: #{tpu_custom_call.1} parent=11 // pred_check
          %p265 = pneg %p131
        $region26: #{tpu_custom_call.1} parent=11 // pred_check_branch
          %267 = sbr.rel (%p265) target = $region28
        $region27: #{tpu_custom_call.1} parent=11 // pred_region
          _
        $region28: #{tpu_custom_call.1} parent=11 // pred_fallthru
          _
        // Predicated region
        $region29: #{tpu_custom_call.1} parent=11 // pred_check
          %p268 = pneg %p152
        $region30: #{tpu_custom_call.1} parent=11 // pred_check_branch
          %270 = sbr.rel (%p268) target = $region32
        $region31: #{tpu_custom_call.1} parent=11 // pred_region
          _
        $region32: #{tpu_custom_call.1} parent=11 // pred_fallthru
          _
        // Predicated region
        $region33: #{tpu_custom_call.1} parent=11 // pred_check
          %p271 = pneg %p173
        $region34: #{tpu_custom_call.1} parent=11 // pred_check_branch
          %273 = sbr.rel (%p271) target = $region36
        $region35: #{tpu_custom_call.1} parent=11 // pred_region
          _
        $region36: #{tpu_custom_call.1} parent=11 // pred_fallthru
          _
        // Predicated region
        $region37: #{tpu_custom_call.1} parent=11 // pred_check
          %p274 = pneg %p194
        $region38: #{tpu_custom_call.1} parent=11 // pred_check_branch
          %276 = sbr.rel (%p274) target = $region40
        $region39: #{tpu_custom_call.1} parent=11 // pred_region
          _
        $region40: #{tpu_custom_call.1} parent=11 // pred_fallthru
          _
        // Predicated region
        $region41: #{tpu_custom_call.1} parent=11 // pred_check
          %p277 = pneg %p215
        $region42: #{tpu_custom_call.1} parent=11 // pred_check_branch
          %279 = sbr.rel (%p277) target = $region44
        $region43: #{tpu_custom_call.1} parent=11 // pred_region
          _
        $region44: #{tpu_custom_call.1} parent=11 // pred_fallthru
          _
      $region12: #{tpu_custom_call.1} parent=5 // pred_fallthru
        _
      %p280 = scmp.lt.s32.totalorder %s21, 3
      // Predicated region
      $region45: #{tpu_custom_call.1} parent=5 // pred_check
        %p281 = pneg %p280
      $region46: #{tpu_custom_call.1} parent=5 // pred_check_branch
        %283 = sbr.rel (%p281) target = $region48
      $region47: #{tpu_custom_call.1} parent=5 // pred_region
        // Predicated region
        $region49: #{tpu_custom_call.1} parent=47 // pred_check
          %p284 = pneg %p41
        $region50: #{tpu_custom_call.1} parent=47 // pred_check_branch
          %286 = sbr.rel (%p284) target = $region52
        $region51: #{tpu_custom_call.1} parent=47 // pred_region
          %s287 = sand.u32 %s31, 1
          %s288 = scalar_lea.sflag [#allocation3], %s287
          %s289 = sand.u32 %s31, 1
          %s290 = smul.addr %s289, 32
          %s291 = scalar_lea.vmem [#allocation2], %s290
          %s292 = smul.u32 2, %s21
          %s293 = ssub.s32 5, %s292
          %p294 = scmp.lt.s32.totalorder %s293, 2
          %s295 = scalar_select %p294, %s293, 2
          %s296 = smul.u32 128, %s295
          %s297 = smul.u32 %s296, 2
          %s299 = ssub.s32 512, %s297
          %300 = vsyncadd %s288, %s299
          %p301 = scmp.ne.s32.totalorder 0, %s297
          %s302 = smul.addr %s292, 2
          %s303 = smul.addr %s302, 128
          %s304 = scalar_lea.hbm %s0, %s303
          %s305 = smul.u32 16, %s295
          %s306 = sshll.u32 %s291, 4
          %s307 = int_to_ptr.vmem [resolvable:$true] %s306
          %s308 = sshll.u32 %s305, 4
          %312 = dma.hbm_to_vmem [thread:$0]  (%p301), %s304, %s308, %s307, %s288, 256, 256, 16
        $region52: #{tpu_custom_call.1} parent=47 // pred_fallthru
          _
      $region48: #{tpu_custom_call.1} parent=5 // pred_fallthru
        _
      %p313 = scmp.le.s32.totalorder 1, %s21
      %p314 = scmp.lt.s32.totalorder %s21, 4
      %p315 = pnand %p313, %p314
      %p316 = pneg %p315
      // Predicated region
      $region53: #{tpu_custom_call.1} parent=5 // pred_check
        _
      $region54: #{tpu_custom_call.1} parent=5 // pred_check_branch
        %318 = sbr.rel (%p315) target = $region56
      $region55: #{tpu_custom_call.1} parent=5 // pred_region
        %s319 = ssub.s32 %s21, 1
        %s320 = sand.u32 %s34, 1
        %s321 = scalar_lea.sflag [#allocation3], %s320
        %s322 = sand.u32 %s34, 1
        %s323 = smul.addr %s322, 32
        %s324 = scalar_lea.vmem [#allocation2], %s323
        // Predicated region
        $region57: #{tpu_custom_call.1} parent=55 // pred_check
          %p325 = pneg %p47
        $region58: #{tpu_custom_call.1} parent=55 // pred_check_branch
          %327 = sbr.rel (%p325) target = $region60
        $region59: #{tpu_custom_call.1} parent=55 // pred_region
          %328 = dma.done %s321, 512
        $region60: #{tpu_custom_call.1} parent=55 // pred_fallthru
          _
        %s329 = sand.u32 %s34, 1
        %s330 = scalar_lea.sflag [#allocation3], %s329
        %s331 = sand.u32 %s34, 1
        %s332 = smul.addr %s331, 32
        %s333 = scalar_lea.vmem [#allocation2], %s332
        %p334 = pneg %p47
        %p335 = pneg %p44
        %p336 = pneg %p68
        %p337 = pneg %p65
        %p338 = pneg %p89
        %p339 = pneg %p86
        %p340 = pneg %p110
        %p341 = pneg %p107
        %p342 = pneg %p131
        %p343 = pneg %p128
        %p344 = pneg %p152
        %p345 = pneg %p149
        %p346 = pneg %p173
        %p347 = pneg %p170
        %p348 = pneg %p194
        %p349 = pneg %p191
        %p350 = pneg %p215
        %p351 = pneg %p212
        %p352 = pneg %p241
        %p353 = pneg %p238
        %s354 = sand.u32 %s228, 1
        %s355 = scalar_lea.sflag [#allocation4], %s354
        %s356 = sand.u32 %s228, 1
        %s357 = scalar_lea.vmem [#allocation5], %s356
        %s358 = smul.u32 2, %s26
        %s359 = ssub.s32 5, %s358
        %p360 = scmp.lt.s32.totalorder %s359, 2
        %s361 = scalar_select %p360, %s359, 2
        %s362 = smul.u32 128, %s361
        %s363 = smul.u32 %s362, 2
        %v364 = vld [vmem:[%s1] sm:$0xff]
        %v365 = vld [vmem:[%s1 + $0x8] sm:$0xff]
        %v366 = vld [vmem:[%s324] sm:$0xff]
        %v367 = vld [vmem:[%s324 + $0x8] sm:$0xff]
        %v368 = vld [vmem:[%s324 + $0x10] sm:$0xff]
        %v369 = vld [vmem:[%s324 + $0x18] sm:$0xff]
        %v370 = vld [vmem:[%s2] sm:$0xff]
        %372 = vset.pattern.permute.xlu0 0
        %373 = vperm.xlu0 %372, %v370
        %v374 = vpop.permute.xlu0 %373
        %vm376 = vcmask 1006592
        %v378 = vsel %vm376, %v365, 0
        %v381 = vsel %vm376, %v367, 0
        %v384 = vsel %vm376, %v369, 0
        %386 = vmatprep.subr.mxu0 %v381
        %387 = vmatpush1.xpose.msra.mxu0 %v366
        %388 = vmatprep.subr.mxu0 %v384
        %389 = vmatpush1.xpose.msra.mxu0 %v368
        %390 = vmatprep.subr.mxu0 0.0
        %391 = vmatpush1.xpose.msra.mxu0 0.0
        %392 = vmatprep.subr.mxu0 0.0
        %393 = vmatpush1.xpose.msra.mxu0 0.0
        %394 = vmatprep.subr.mxu0 0.0
        %395 = vmatpush1.xpose.msra.mxu0 0.0
        %396 = vmatprep.subr.mxu0 0.0
        %397 = vmatpush1.xpose.msra.mxu0 0.0
        %398 = vmatprep.subr.mxu0 0.0
        %399 = vmatpush1.xpose.msra.mxu0 0.0
        %400 = vmatprep.subr.mxu0 0.0
        %401 = vmatpush1.xpose.msra.mxu0 0.0
        %402 = vmatprep.subr.mxu0 0.0
        %403 = vmatpush1.xpose.msra.mxu0 0.0
        %404 = vmatprep.subr.mxu0 0.0
        %405 = vmatpush1.xpose.msra.mxu0 0.0
        %406 = vmatprep.subr.mxu0 0.0
        %407 = vmatpush1.xpose.msra.mxu0 0.0
        %408 = vmatprep.subr.mxu0 0.0
        %409 = vmatpush1.xpose.msra.mxu0 0.0
        %410 = vmatprep.subr.mxu0 0.0
        %411 = vmatpush1.xpose.msra.mxu0 0.0
        %412 = vmatprep.subr.mxu0 0.0
        %413 = vmatpush1.xpose.msra.mxu0 0.0
        %414 = vmatprep.subr.mxu0 0.0
        %415 = vmatpush1.xpose.msra.mxu0 0.0
        %416 = vmatprep.subr.mxu0 0.0
        %417 = vmatpush1.xpose.msra.mxu0 0.0
        %418 = vmatprep.subr.mxu0 0.0
        %419 = vmatpush1.xpose.msra.mxu0 0.0
        %420 = vmatprep.subr.mxu0 0.0
        %421 = vmatpush1.xpose.msra.mxu0 0.0
        %422 = vmatprep.subr.mxu0 0.0
        %423 = vmatpush1.xpose.msra.mxu0 0.0
        %424 = vmatprep.subr.mxu0 0.0
        %425 = vmatpush1.xpose.msra.mxu0 0.0
        %426 = vmatprep.subr.mxu0 0.0
        %427 = vmatpush1.xpose.msra.mxu0 0.0
        %428 = vmatprep.subr.mxu0 0.0
        %429 = vmatpush1.xpose.msra.mxu0 0.0
        %430 = vmatprep.subr.mxu0 0.0
        %431 = vmatpush1.xpose.msra.mxu0 0.0
        %432 = vmatprep.subr.mxu0 0.0
        %433 = vmatpush1.xpose.msra.mxu0 0.0
        %434 = vmatprep.subr.mxu0 0.0
        %435 = vmatpush1.xpose.msra.mxu0 0.0
        %436 = vmatprep.subr.mxu0 0.0
        %437 = vmatpush1.xpose.msra.mxu0 0.0
        %438 = vmatprep.subr.mxu0 0.0
        %439 = vmatpush1.xpose.msra.mxu0 0.0
        %440 = vmatprep.subr.mxu0 0.0
        %441 = vmatpush1.xpose.msra.mxu0 0.0
        %442 = vmatprep.subr.mxu0 0.0
        %443 = vmatpush1.xpose.msra.mxu0 0.0
        %444 = vmatprep.subr.mxu0 0.0
        %445 = vmatpush1.xpose.msra.mxu0 0.0
        %446 = vmatprep.subr.mxu0 0.0
        %447 = vmatpush1.xpose.msra.mxu0 0.0
        %448 = vmatprep.subr.mxu0 0.0
        %449 = vmatpush1.xpose.msra.mxu0 0.0
        %450 = vmatprep.mubr.f32.mxu0 %v378
        %451 = vmatmul.mubr.f32.gmra.mrb[0].mxu0 %v364
        %v452 = vpop.f32.mrb[0].mxu0
        %v453 = vadd.f32 %v374, %v452
        %v454 = vpop.f32.mrb[0].mxu0
        %455 = vdwg.mxu0
        %v456 = vtanh.pop %v453
        %v457 = vld [vmem:[%s3] sm:$0xff]
        %v458 = vld [vmem:[%s4] sm:$0xff]
        %460 = vset.pattern.permute.xlu0 0
        %461 = vperm.xlu0 %460, %v458
        %v462 = vpop.permute.xlu0 %461
        %vm464 = vcmask 64512
        %v466 = vsel %vm464, %v457, 0
        %468 = vmatprep.subr.mxu0 0.0
        %469 = vmatpush1.msra.mxu0 %v456
        %470 = vmatprep.subr.mxu0 0.0
        %471 = vmatpush1.msra.mxu0 0.0
        %472 = vmatprep.subr.mxu0 0.0
        %473 = vmatpush1.msra.mxu0 0.0
        %474 = vmatprep.subr.mxu0 0.0
        %475 = vmatpush1.msra.mxu0 0.0
        %476 = vmatprep.subr.mxu0 0.0
        %477 = vmatpush1.msra.mxu0 0.0
        %478 = vmatprep.subr.mxu0 0.0
        %479 = vmatpush1.msra.mxu0 0.0
        %480 = vmatprep.subr.mxu0 0.0
        %481 = vmatpush1.msra.mxu0 0.0
        %482 = vmatprep.subr.mxu0 0.0
        %483 = vmatpush1.msra.mxu0 0.0
        %484 = vmatprep.subr.mxu0 0.0
        %485 = vmatpush1.msra.mxu0 0.0
        %486 = vmatprep.subr.mxu0 0.0
        %487 = vmatpush1.msra.mxu0 0.0
        %488 = vmatprep.subr.mxu0 0.0
        %489 = vmatpush1.msra.mxu0 0.0
        %490 = vmatprep.subr.mxu0 0.0
        %491 = vmatpush1.msra.mxu0 0.0
        %492 = vmatprep.subr.mxu0 0.0
        %493 = vmatpush1.msra.mxu0 0.0
        %494 = vmatprep.subr.mxu0 0.0
        %495 = vmatpush1.msra.mxu0 0.0
        %496 = vmatprep.subr.mxu0 0.0
        %497 = vmatpush1.msra.mxu0 0.0
        %498 = vmatprep.subr.mxu0 0.0
        %499 = vmatpush1.msra.mxu0 0.0
        %500 = vmatprep.subr.mxu0 0.0
        %501 = vmatpush1.msra.mxu0 0.0
        %502 = vmatprep.subr.mxu0 0.0
        %503 = vmatpush1.msra.mxu0 0.0
        %504 = vmatprep.subr.mxu0 0.0
        %505 = vmatpush1.msra.mxu0 0.0
        %506 = vmatprep.subr.mxu0 0.0
        %507 = vmatpush1.msra.mxu0 0.0
        %508 = vmatprep.subr.mxu0 0.0
        %509 = vmatpush1.msra.mxu0 0.0
        %510 = vmatprep.subr.mxu0 0.0
        %511 = vmatpush1.msra.mxu0 0.0
        %512 = vmatprep.subr.mxu0 0.0
        %513 = vmatpush1.msra.mxu0 0.0
        %514 = vmatprep.subr.mxu0 0.0
        %515 = vmatpush1.msra.mxu0 0.0
        %516 = vmatprep.subr.mxu0 0.0
        %517 = vmatpush1.msra.mxu0 0.0
        %518 = vmatprep.subr.mxu0 0.0
        %519 = vmatpush1.msra.mxu0 0.0
        %520 = vmatprep.subr.mxu0 0.0
        %521 = vmatpush1.msra.mxu0 0.0
        %522 = vmatprep.subr.mxu0 0.0
        %523 = vmatpush1.msra.mxu0 0.0
        %524 = vmatprep.subr.mxu0 0.0
        %525 = vmatpush1.msra.mxu0 0.0
        %526 = vmatprep.subr.mxu0 0.0
        %527 = vmatpush1.msra.mxu0 0.0
        %528 = vmatprep.subr.mxu0 0.0
        %529 = vmatpush1.msra.mxu0 0.0
        %530 = vmatprep.subr.mxu0 0.0
        %531 = vmatpush1.msra.mxu0 0.0
        %532 = vmatprep.mubr.f32.mxu0 0.0
        %533 = vmatmul.mubr.f32.gmra.mrb[0].mxu0 %v466
        %v534 = vpop.f32.mrb[0].mxu0
        %v535 = vadd.f32 %v462, %v534
        %v536 = vpop.f32.mrb[0].mxu0
        %537 = vdwg.mxu0
        %v538 = vtanh.pop %v535
        %v539 = vld [vmem:[%s5] sm:$0xff]
        %v540 = vld [vmem:[%s6] sm:$0xff]
        %542 = vset.pattern.permute.xlu0 0
        %543 = vperm.xlu0 %542, %v540
        %v544 = vpop.permute.xlu0 %543
        %v547 = vsel %vm464, %v539, 0
        %549 = vmatprep.subr.mxu0 0.0
        %550 = vmatpush1.msra.mxu0 %v538
        %551 = vmatprep.subr.mxu0 0.0
        %552 = vmatpush1.msra.mxu0 0.0
        %553 = vmatprep.subr.mxu0 0.0
        %554 = vmatpush1.msra.mxu0 0.0
        %555 = vmatprep.subr.mxu0 0.0
        %556 = vmatpush1.msra.mxu0 0.0
        %557 = vmatprep.subr.mxu0 0.0
        %558 = vmatpush1.msra.mxu0 0.0
        %559 = vmatprep.subr.mxu0 0.0
        %560 = vmatpush1.msra.mxu0 0.0
        %561 = vmatprep.subr.mxu0 0.0
        %562 = vmatpush1.msra.mxu0 0.0
        %563 = vmatprep.subr.mxu0 0.0
        %564 = vmatpush1.msra.mxu0 0.0
        %565 = vmatprep.subr.mxu0 0.0
        %566 = vmatpush1.msra.mxu0 0.0
        %567 = vmatprep.subr.mxu0 0.0
        %568 = vmatpush1.msra.mxu0 0.0
        %569 = vmatprep.subr.mxu0 0.0
        %570 = vmatpush1.msra.mxu0 0.0
        %571 = vmatprep.subr.mxu0 0.0
        %572 = vmatpush1.msra.mxu0 0.0
        %573 = vmatprep.subr.mxu0 0.0
        %574 = vmatpush1.msra.mxu0 0.0
        %575 = vmatprep.subr.mxu0 0.0
        %576 = vmatpush1.msra.mxu0 0.0
        %577 = vmatprep.subr.mxu0 0.0
        %578 = vmatpush1.msra.mxu0 0.0
        %579 = vmatprep.subr.mxu0 0.0
        %580 = vmatpush1.msra.mxu0 0.0
        %581 = vmatprep.subr.mxu0 0.0
        %582 = vmatpush1.msra.mxu0 0.0
        %583 = vmatprep.subr.mxu0 0.0
        %584 = vmatpush1.msra.mxu0 0.0
        %585 = vmatprep.subr.mxu0 0.0
        %586 = vmatpush1.msra.mxu0 0.0
        %587 = vmatprep.subr.mxu0 0.0
        %588 = vmatpush1.msra.mxu0 0.0
        %589 = vmatprep.subr.mxu0 0.0
        %590 = vmatpush1.msra.mxu0 0.0
        %591 = vmatprep.subr.mxu0 0.0
        %592 = vmatpush1.msra.mxu0 0.0
        %593 = vmatprep.subr.mxu0 0.0
        %594 = vmatpush1.msra.mxu0 0.0
        %595 = vmatprep.subr.mxu0 0.0
        %596 = vmatpush1.msra.mxu0 0.0
        %597 = vmatprep.subr.mxu0 0.0
        %598 = vmatpush1.msra.mxu0 0.0
        %599 = vmatprep.subr.mxu0 0.0
        %600 = vmatpush1.msra.mxu0 0.0
        %601 = vmatprep.subr.mxu0 0.0
        %602 = vmatpush1.msra.mxu0 0.0
        %603 = vmatprep.subr.mxu0 0.0
        %604 = vmatpush1.msra.mxu0 0.0
        %605 = vmatprep.subr.mxu0 0.0
        %606 = vmatpush1.msra.mxu0 0.0
        %607 = vmatprep.subr.mxu0 0.0
        %608 = vmatpush1.msra.mxu0 0.0
        %609 = vmatprep.subr.mxu0 0.0
        %610 = vmatpush1.msra.mxu0 0.0
        %611 = vmatprep.subr.mxu0 0.0
        %612 = vmatpush1.msra.mxu0 0.0
        %613 = vmatprep.mubr.f32.mxu0 0.0
        %614 = vmatmul.mubr.f32.gmra.mrb[0].mxu0 %v547
        %v615 = vpop.f32.mrb[0].mxu0
        %v616 = vadd.f32 %v544, %v615
        %v617 = vpop.f32.mrb[0].mxu0
        %618 = vdwg.mxu0
        %v619 = vtanh.pop %v616
        %v620 = vld [vmem:[%s7] sm:$0xff]
        %v621 = vld [vmem:[%s8] sm:$0xff]
        %623 = vset.pattern.permute.xlu0 0
        %624 = vperm.xlu0 %623, %v621
        %v625 = vpop.permute.xlu0 %624
        %v628 = vsel %vm464, %v620, 0
        %630 = vmatprep.subr.mxu0 0.0
        %631 = vmatpush1.msra.mxu0 %v619
        %632 = vmatprep.subr.mxu0 0.0
        %633 = vmatpush1.msra.mxu0 0.0
        %634 = vmatprep.subr.mxu0 0.0
        %635 = vmatpush1.msra.mxu0 0.0
        %636 = vmatprep.subr.mxu0 0.0
        %637 = vmatpush1.msra.mxu0 0.0
        %638 = vmatprep.subr.mxu0 0.0
        %639 = vmatpush1.msra.mxu0 0.0
        %640 = vmatprep.subr.mxu0 0.0
        %641 = vmatpush1.msra.mxu0 0.0
        %642 = vmatprep.subr.mxu0 0.0
        %643 = vmatpush1.msra.mxu0 0.0
        %644 = vmatprep.subr.mxu0 0.0
        %645 = vmatpush1.msra.mxu0 0.0
        %646 = vmatprep.subr.mxu0 0.0
        %647 = vmatpush1.msra.mxu0 0.0
        %648 = vmatprep.subr.mxu0 0.0
        %649 = vmatpush1.msra.mxu0 0.0
        %650 = vmatprep.subr.mxu0 0.0
        %651 = vmatpush1.msra.mxu0 0.0
        %652 = vmatprep.subr.mxu0 0.0
        %653 = vmatpush1.msra.mxu0 0.0
        %654 = vmatprep.subr.mxu0 0.0
        %655 = vmatpush1.msra.mxu0 0.0
        %656 = vmatprep.subr.mxu0 0.0
        %657 = vmatpush1.msra.mxu0 0.0
        %658 = vmatprep.subr.mxu0 0.0
        %659 = vmatpush1.msra.mxu0 0.0
        %660 = vmatprep.subr.mxu0 0.0
        %661 = vmatpush1.msra.mxu0 0.0
        %662 = vmatprep.subr.mxu0 0.0
        %663 = vmatpush1.msra.mxu0 0.0
        %664 = vmatprep.subr.mxu0 0.0
        %665 = vmatpush1.msra.mxu0 0.0
        %666 = vmatprep.subr.mxu0 0.0
        %667 = vmatpush1.msra.mxu0 0.0
        %668 = vmatprep.subr.mxu0 0.0
        %669 = vmatpush1.msra.mxu0 0.0
        %670 = vmatprep.subr.mxu0 0.0
        %671 = vmatpush1.msra.mxu0 0.0
        %672 = vmatprep.subr.mxu0 0.0
        %673 = vmatpush1.msra.mxu0 0.0
        %674 = vmatprep.subr.mxu0 0.0
        %675 = vmatpush1.msra.mxu0 0.0
        %676 = vmatprep.subr.mxu0 0.0
        %677 = vmatpush1.msra.mxu0 0.0
        %678 = vmatprep.subr.mxu0 0.0
        %679 = vmatpush1.msra.mxu0 0.0
        %680 = vmatprep.subr.mxu0 0.0
        %681 = vmatpush1.msra.mxu0 0.0
        %682 = vmatprep.subr.mxu0 0.0
        %683 = vmatpush1.msra.mxu0 0.0
        %684 = vmatprep.subr.mxu0 0.0
        %685 = vmatpush1.msra.mxu0 0.0
        %686 = vmatprep.subr.mxu0 0.0
        %687 = vmatpush1.msra.mxu0 0.0
        %688 = vmatprep.subr.mxu0 0.0
        %689 = vmatpush1.msra.mxu0 0.0
        %690 = vmatprep.subr.mxu0 0.0
        %691 = vmatpush1.msra.mxu0 0.0
        %692 = vmatprep.subr.mxu0 0.0
        %693 = vmatpush1.msra.mxu0 0.0
        %694 = vmatprep.mubr.f32.mxu0 0.0
        %695 = vmatmul.mubr.f32.gmra.mrb[0].mxu0 %v628
        %v696 = vpop.f32.mrb[0].mxu0
        %v697 = vadd.f32 %v625, %v696
        %v698 = vpop.f32.mrb[0].mxu0
        %699 = vdwg.mxu0
        %vm700 = vcmask 122880
        %701 = vst.msk [vmem:[%s357] sm:$0x1] %vm700, %v697
        %s702 = sand.u32 %s228, 1
        %s703 = scalar_lea.sflag [#allocation4], %s702
        %s704 = sand.u32 %s228, 1
        %s705 = scalar_lea.vmem [#allocation5], %s704
        // Predicated region
        $region61: #{tpu_custom_call.1} parent=55 // pred_check
          %p706 = pneg %p238
        $region62: #{tpu_custom_call.1} parent=55 // pred_check_branch
          %708 = sbr.rel (%p706) target = $region64
        $region63: #{tpu_custom_call.1} parent=55 // pred_region
          %s710 = ssub.s32 16, 16
          %711 = vsyncadd %s703, %s710
          %s712 = smul.addr %s26, 16
          %s713 = scalar_lea.hbm %s9, %s712
          %s715 = sshll.u32 %s705, 4
          %s716 = int_to_ptr.vmem [resolvable:$true] %s715
          %718 = dma.vmem_to_hbm [thread:$0]  %s716, 16, %s713, %s703
        $region64: #{tpu_custom_call.1} parent=55 // pred_fallthru
          _
      $region56: #{tpu_custom_call.1} parent=5 // pred_fallthru
        _
      %p719 = scmp.le.s32.totalorder 2, %s21
      // Predicated region
      $region65: #{tpu_custom_call.1} parent=5 // pred_check
        %p720 = pneg %p719
      $region66: #{tpu_custom_call.1} parent=5 // pred_check_branch
        %722 = sbr.rel (%p720) target = $region68
      $region67: #{tpu_custom_call.1} parent=5 // pred_region
        %s723 = ssub.s32 %s21, 2
        // Predicated region
        $region69: #{tpu_custom_call.1} parent=67 // pred_check
          %p724 = pneg %p244
        $region70: #{tpu_custom_call.1} parent=67 // pred_check_branch
          %726 = sbr.rel (%p724) target = $region72
        $region71: #{tpu_custom_call.1} parent=67 // pred_region
          %s727 = sand.u32 %s229, 1
          %s728 = scalar_lea.sflag [#allocation4], %s727
          %s729 = sand.u32 %s229, 1
          %s730 = scalar_lea.vmem [#allocation5], %s729
          %731 = dma.done %s728, 16
        $region72: #{tpu_custom_call.1} parent=67 // pred_fallthru
          _
      $region68: #{tpu_custom_call.1} parent=5 // pred_fallthru
        _
    $region6: #{tpu_custom_call.1} parent=1 // loop_footer
      %s25 = sadd.s32 1, %s21
    $region7: #{tpu_custom_call.1} parent=1 // loop_footer_branch
      %20 = sbr.rel target = $region3
    $region8: #{tpu_custom_call.1} parent=1 // loop_exit
      _
    %732 = vsyncpa [#allocation3], 1
    %s733 = scalar_lea.sflag [#allocation3], 1
    %734 = vsyncpa %s733, 1
    %735 = vsyncpa [#allocation4], 1
    %s736 = scalar_lea.sflag [#allocation4], 1
    %737 = vsyncpa %s736, 1

</llo_original>
